<compile_context>
chip_gen: v7x
topology: tpu7x:2x2x1
jax: 0.10.0
libtpu: 0.0.40
codegen_flags: <defaults>
</compile_context>

<pallas_src>
import functools

import jax
import jax.numpy as jnp
from jax.experimental import pallas as pl
from jax.experimental.pallas import tpu as pltpu


def _ceil_div(a, b):
    return -(-a // b)


def _round_up(a, m):
    return _ceil_div(a, m) * m


def _soft_length_kernel(freq_ref, tgt_ref, cls_ref, w_ref, o_ref, *, batch, bb):
    """One batch tile.

    freq_ref : (BB, T*C)   frequencies tile (native dtype, upcast in-kernel)
    tgt_ref  : (BB, 1)     int32 targets tile
    cls_ref  : (1, T*C)    int32 class index of each flat (t, c) lane
    w_ref    : (2, T*C)    row 0 = lo_flat(t), row 1 = dd_flat(t)
    o_ref    : (1, 8, 128) lane-dense per-tile partial sum (scalar broadcast)
    """
    freq = freq_ref[...].astype(jnp.float32)                 # (BB, TC) f32
    tgt = tgt_ref[...]                                        # (BB, 1) int32
    cls = cls_ref[...]                                        # (1, TC) int32
    lo = w_ref[0:1, :]                                        # (1, TC)
    dd = w_ref[1:2, :]                                        # (1, TC)

    w = lo + jnp.where(cls == tgt, dd, 0.0)                   # (BB, TC)
    per = jnp.sum(freq * w, axis=1, keepdims=True)            # (BB, 1)

    # Mask rows of the (possibly ragged, unpadded) last tile.
    row = pl.program_id(0) * bb + jax.lax.broadcasted_iota(jnp.int32, per.shape, 0)
    per = jnp.where(row < batch, per, 0.0)

    part = jnp.sum(per, axis=0, keepdims=True)                # (1, 1)
    o_ref[...] = jnp.broadcast_to(part[None, :, :], o_ref.shape)


def soft_length_loss(frequencies, targets, epsilon=0.001):
    B, T, C = frequencies.shape
    TC = T * C
    eps = float(epsilon)
    if frequencies.dtype not in (jnp.float32, jnp.bfloat16):
        frequencies = frequencies.astype(jnp.float32)

    # Two length-T weight vectors (instead of a (T,C,C) loss table), flattened
    # over the lane-dense (t, c) axis; the 2*T logs happen once here in JAX.
    steps = jnp.arange(1, T + 1, dtype=jnp.float32)
    den = (C - 1) * eps * steps + 1.0
    dd = jnp.log(eps * steps)                                 # loss_diag - loss_off
    lo = jnp.log(den) - dd                                    # off-diagonal loss
    w = jnp.stack([jnp.repeat(lo, C), jnp.repeat(dd, C)], axis=0)       # (2, TC)
    cls = jnp.tile(jnp.arange(C, dtype=jnp.int32), T)[None, :]          # (1, TC)

    freq2 = frequencies.reshape(B, TC)          # contiguous reshape: no HBM copy
    tgt2 = targets.astype(jnp.int32).reshape(B, 1)

    # Batch tile: ~2 MiB f32 working set per tile (>= ~85% of HBM roofline),
    # multiple of 16 sublanes (valid tiling for f32 and bf16), kept to >= 2
    # tiles when B allows so v7x can shard the "parallel" axis across its two
    # TensorCores, and full-extent when B is small.
    rows = max(16, ((2 << 20) // (TC * 4)) // 16 * 16)
    if B > 16:
        rows = min(rows, _round_up(_ceil_div(B, 2), 16))
    BB = B if rows >= B else rows
    NB = _ceil_div(B, BB)
    # TODO(synk): for extreme T*C (a single 16-row tile + temporaries beyond
    # the 32 MiB scoped limit) add a lane-chunked reduction grid axis.

    out = pl.pallas_call(
        functools.partial(_soft_length_kernel, batch=B, bb=BB),
        out_shape=jax.ShapeDtypeStruct((NB, 8, 128), jnp.float32),
        grid_spec=pltpu.PrefetchScalarGridSpec(
            num_scalar_prefetch=0,
            grid=(NB,),
            in_specs=[
                pl.BlockSpec((BB, TC), lambda nb: (nb, 0)),   # frequencies
                pl.BlockSpec((BB, 1), lambda nb: (nb, 0)),    # int32 targets
                pl.BlockSpec((1, TC), lambda nb: (0, 0)),     # class indices
                pl.BlockSpec((2, TC), lambda nb: (0, 0)),     # lo/dd weights
            ],
            out_specs=pl.BlockSpec((1, 8, 128), lambda nb: (nb, 0, 0)),
        ),
        compiler_params=pltpu.CompilerParams(
            dimension_semantics=("parallel",),
            vmem_limit_bytes=32 * 1024 * 1024),
    )(freq2, tgt2, cls, w)

    # Cross-tile mean: NB scalars, trivial in plain JAX.
    return jnp.sum(out[:, 0, 0]) / B


def soft_length_loss_ref(frequencies, targets, epsilon=0.001):
    """Pure-JAX reference reproducing the PyTorch semantics."""
    frequencies = frequencies.astype(jnp.float32)
    B, T, C = frequencies.shape
    indices = jnp.eye(C, dtype=jnp.float32)[None, :, :]                 # (1, C, C)
    steps = jnp.arange(1, T + 1, dtype=jnp.float32).reshape(T, 1, 1)    # (T, 1, 1)
    prob = ((1 - indices) * epsilon * steps + indices) / (
        (C - 1) * epsilon * steps + 1)                                  # (T, C, C)
    losses_tbl = -jnp.log(prob)                                         # (T, C, C)
    gathered = jnp.take(losses_tbl, targets, axis=2)                    # (T, C, B)
    losses = jnp.transpose(gathered, (2, 0, 1))                         # (B, T, C)
    return jnp.mean(jnp.sum(frequencies * losses, axis=(1, 2)))


if __name__ == "__main__":
    key = jax.random.PRNGKey(0)

    def _check(B, T, C, dtype=jnp.float32):
        k = jax.random.fold_in(key, B * 100003 + T * 131 + C)
        k_freq, k_tgt = jax.random.split(k)
        freq = jax.random.uniform(k_freq, (B, T, C), dtype=jnp.float32).astype(dtype)
        tgt = jax.random.randint(k_tgt, (B,), 0, C, dtype=jnp.int32)
        got = jax.block_until_ready(soft_length_loss(freq, tgt, epsilon=0.001))
        want = jax.block_until_ready(soft_length_loss_ref(freq, tgt, epsilon=0.001))
        assert jnp.abs(got - want) <= 1e-4 * (1.0 + jnp.abs(want)), (B, T, C, got, want)

    _check(2, 8, 8)                          # module-implied small shape (full-extent tile)
    _check(20, 16, 128)                      # ragged last tile + 2 "parallel" tiles
    _check(9, 4, 10)                         # non-power-of-2 dims, full-extent tile
    _check(20, 16, 128, dtype=jnp.bfloat16)  # narrow bf16 DMA path, upcast in-kernel
    print("KERNEL_OK")
</pallas_src>

<mosaic_0001>
module attributes {stable_mosaic.version = 11 : i64} {
  func.func @_soft_length_kernel(%arg0: i32, %arg1: memref<2x64xf32, #tpu.memory_space<vmem>>, %arg2: memref<2x1xi32, #tpu.memory_space<vmem>>, %arg3: memref<1x64xi32, #tpu.memory_space<vmem>>, %arg4: memref<2x64xf32, #tpu.memory_space<vmem>>, %arg5: memref<1x8x128xf32, #tpu.memory_space<vmem>>) attributes {dimension_semantics = [#tpu.dimension_semantics<parallel>], iteration_bounds = array<i64: 1>, scalar_prefetch = 0 : i64, scratch_operands = 0 : i64, tpu.core_type = #tpu.core_type<tc>, window_params = [{transform_indices = @transform_0, window_bounds = array<i64: 2, 64>}, {transform_indices = @transform_1, window_bounds = array<i64: 2, 1>}, {pipeline_mode = #tpu.pipeline_mode<synchronous>, transform_indices = @transform_2, window_bounds = array<i64: 1, 64>}, {pipeline_mode = #tpu.pipeline_mode<synchronous>, transform_indices = @transform_3, window_bounds = array<i64: 2, 64>}, {transform_indices = @transform_4, window_bounds = array<i64: 1, 8, 128>}]} {
    %c0 = arith.constant 0 : index
    %c0_0 = arith.constant 0 : index
    %0 = vector.load %arg1[%c0, %c0_0] : memref<2x64xf32, #tpu.memory_space<vmem>>, vector<2x64xf32>
    %c0_1 = arith.constant 0 : index
    %c0_2 = arith.constant 0 : index
    %1 = vector.load %arg2[%c0_1, %c0_2] : memref<2x1xi32, #tpu.memory_space<vmem>>, vector<2x1xi32>
    %c0_3 = arith.constant 0 : index
    %c0_4 = arith.constant 0 : index
    %2 = vector.load %arg3[%c0_3, %c0_4] : memref<1x64xi32, #tpu.memory_space<vmem>>, vector<1x64xi32>
    %c0_5 = arith.constant 0 : index
    %c0_6 = arith.constant 0 : index
    %3 = vector.load %arg4[%c0_5, %c0_6] : memref<2x64xf32, #tpu.memory_space<vmem>>, vector<1x64xf32>
    %c1 = arith.constant 1 : index
    %c0_7 = arith.constant 0 : index
    %4 = vector.load %arg4[%c1, %c0_7] : memref<2x64xf32, #tpu.memory_space<vmem>>, vector<1x64xf32>
    %5 = vector.broadcast %2 : vector<1x64xi32> to vector<2x64xi32>
    %6 = vector.broadcast %1 : vector<2x1xi32> to vector<2x64xi32>
    %7 = arith.cmpi eq, %5, %6 : vector<2x64xi32>
    %cst = arith.constant 0.000000e+00 : f32
    %8 = vector.shape_cast %4 : vector<1x64xf32> to vector<1x64xf32>
    %9 = vector.broadcast %8 : vector<1x64xf32> to vector<2x64xf32>
    %10 = vector.broadcast %cst : f32 to vector<2x64xf32>
    %11 = arith.select %7, %9, %10 : vector<2x64xi1>, vector<2x64xf32>
    %12 = vector.broadcast %3 : vector<1x64xf32> to vector<2x64xf32>
    %13 = arith.addf %12, %11 : vector<2x64xf32>
    %14 = arith.mulf %0, %13 : vector<2x64xf32>
    %cst_8 = arith.constant dense<0.000000e+00> : vector<2xf32>
    %15 = vector.multi_reduction <add>, %14, %cst_8 [1] : vector<2x64xf32> to vector<2xf32>
    %16 = vector.shape_cast %15 : vector<2xf32> to vector<2x1xf32>
    %c2_i32 = arith.constant 2 : i32
    %17 = arith.muli %arg0, %c2_i32 : i32
    %18 = tpu.iota {dimensions = array<i32: 0>} : vector<2x1xi32>
    %19 = vector.broadcast %17 : i32 to vector<2x1xi32>
    %20 = arith.addi %19, %18 : vector<2x1xi32>
    %c2_i32_9 = arith.constant 2 : i32
    %21 = vector.broadcast %c2_i32_9 : i32 to vector<2x1xi32>
    %22 = arith.cmpi slt, %20, %21 : vector<2x1xi32>
    %cst_10 = arith.constant 0.000000e+00 : f32
    %23 = vector.broadcast %cst_10 : f32 to vector<2x1xf32>
    %24 = arith.select %22, %16, %23 : vector<2x1xi1>, vector<2x1xf32>
    %cst_11 = arith.constant dense<0.000000e+00> : vector<1xf32>
    %25 = vector.multi_reduction <add>, %24, %cst_11 [0] : vector<2x1xf32> to vector<1xf32>
    %26 = vector.shape_cast %25 : vector<1xf32> to vector<1x1xf32>
    %27 = vector.shape_cast %26 : vector<1x1xf32> to vector<1x1x1xf32>
    %28 = vector.shape_cast %27 : vector<1x1x1xf32> to vector<1x1x1xf32>
    %29 = vector.broadcast %28 : vector<1x1x1xf32> to vector<1x8x128xf32>
    %c0_12 = arith.constant 0 : index
    %c0_13 = arith.constant 0 : index
    %c0_14 = arith.constant 0 : index
    %30 = vector.load %arg5[%c0_12, %c0_13, %c0_14] : memref<1x8x128xf32, #tpu.memory_space<vmem>>, vector<1x8x128xf32>
    tpu.vector_store %arg5[%c0_12, %c0_13, %c0_14], %29 {strides = array<i32>} : memref<1x8x128xf32, #tpu.memory_space<vmem>>, vector<1x8x128xf32>,
    return
  }
  func.func @transform_0(%arg0: i32) -> (i32, i32) {
    %c0_i32 = arith.constant 0 : i32
    %c0_i32_0 = arith.constant 0 : i32
    return %arg0, %c0_i32 : i32, i32
  }
  func.func @transform_1(%arg0: i32) -> (i32, i32) {
    %c0_i32 = arith.constant 0 : i32
    %c0_i32_0 = arith.constant 0 : i32
    return %arg0, %c0_i32 : i32, i32
  }
  func.func @transform_2(%arg0: i32) -> (i32, i32) {
    %c0_i32 = arith.constant 0 : i32
    %c0_i32_0 = arith.constant 0 : i32
    %c0_i32_1 = arith.constant 0 : i32
    return %c0_i32, %c0_i32_0 : i32, i32
  }
  func.func @transform_3(%arg0: i32) -> (i32, i32) {
    %c0_i32 = arith.constant 0 : i32
    %c0_i32_0 = arith.constant 0 : i32
    %c0_i32_1 = arith.constant 0 : i32
    return %c0_i32, %c0_i32_0 : i32, i32
  }
  func.func @transform_4(%arg0: i32) -> (i32, i32, i32) {
    %c0_i32 = arith.constant 0 : i32
    %c0_i32_0 = arith.constant 0 : i32
    %c0_i32_1 = arith.constant 0 : i32
    return %arg0, %c0_i32, %c0_i32_0 : i32, i32, i32
  }
}

</mosaic_0001>

<llo_original>
// kernel: tpu_custom_call.1
$region0: #{tpu_custom_call.1}
  #allocation0 [shape = 'u32[]', space=smem, size = 0x4, offset = 0x4, fixed_abs, tag = 'smem constant byte address 0x4 - core index']
  #allocation1 [shape = 'u32[144,128]{1,0:T(1,128)}', space=vmem, size = 0x12000, scoped, tag = 'internal scratch']
  %s0 = inlined_call_operand.vmem [shape: f32[2,64], index: 0, kind: input, shape index: {}]
  %s1 = inlined_call_operand.vmem [shape: s32[2,1], index: 1, kind: input, shape index: {}]
  %s2 = inlined_call_operand.vmem [shape: s32[1,64], index: 2, kind: input, shape index: {}]
  %s3 = inlined_call_operand.vmem [shape: f32[2,64], index: 3, kind: input, shape index: {}]
  %s4 = inlined_call_operand.hbm [shape: f32[1,8,128], index: 4, kind: output, shape index: {}]
  %s5 = sld [smem:[#allocation0]]
  $region26: #{tpu_custom_call.1} parent=0
    _
  %s7 = ssub.s32 1, %s5
  %s8 = scalar_select 0, %s7, %s5
  $region1: #{tpu_custom_call.1} parent=0
    #allocation2 [shape = 'u8[4096]{0}', space=vmem, size = 0x1000, scoped, tag = 'output window, operand 0, single buffered']
    #allocation3 [shape = 's32[1]{0}', space=sflag, size = 0x4, scoped, tag = 'scoped memory for tpu_custom_call.1']
    %9 = vsyncpa [#allocation3], 0
    // Predicated region
    $region2: #{tpu_custom_call.1} parent=1 // pred_check
      _
    $region3: #{tpu_custom_call.1} parent=1 // pred_check_branch
      %11 = sbr.rel (0) target = $region5
    $region4: #{tpu_custom_call.1} parent=1 // pred_region
      _
    $region5: #{tpu_custom_call.1} parent=1 // pred_fallthru
      _
    // Predicated region
    $region6: #{tpu_custom_call.1} parent=1 // pred_check
      _
    $region7: #{tpu_custom_call.1} parent=1 // pred_check_branch
      %13 = sbr.rel (0) target = $region9
    $region8: #{tpu_custom_call.1} parent=1 // pred_region
      _
    $region9: #{tpu_custom_call.1} parent=1 // pred_fallthru
      _
    // Predicated region
    $region10: #{tpu_custom_call.1} parent=1 // pred_check
      _
    $region11: #{tpu_custom_call.1} parent=1 // pred_check_branch
      %15 = sbr.rel (0) target = $region13
    $region12: #{tpu_custom_call.1} parent=1 // pred_region
      _
    $region13: #{tpu_custom_call.1} parent=1 // pred_fallthru
      _
    // Predicated region
    $region14: #{tpu_custom_call.1} parent=1 // pred_check
      _
    $region15: #{tpu_custom_call.1} parent=1 // pred_check_branch
      %17 = sbr.rel (0) target = $region17
    $region16: #{tpu_custom_call.1} parent=1 // pred_region
      _
    $region17: #{tpu_custom_call.1} parent=1 // pred_fallthru
      _
    %v18 = vld [vmem:[%s0] sm:$0x3]
    %v19 = vld [vmem:[%s1] sm:$0x3]
    %v20 = vld [vmem:[%s2] sm:$0x1]
    %v21 = vld [vmem:[%s3] sm:$0x1]
    %v22 = vld [vmem:[%s3 + $0x1] sm:$0x1]
    %v23 = vlaneseq
    %v24 = vshrl.u32 %v23, 7
    %v25 = vsub.s32 0, %v24
    %v26 = vrot.slane %v20, %v25
    %27 = vset.pattern.permute.xlu0 0
    %28 = vperm.xlu0 %27, %v19
    %v29 = vpop.permute.xlu0 %28
    %vm30 = vcmp.eq.s32.totalorder %v26, %v29
    %v31 = vlaneseq
    %v32 = vshrl.u32 %v31, 7
    %v33 = vsub.s32 0, %v32
    %v34 = vrot.slane %v22, %v33
    %v35 = vsel %vm30, %v34, 0.0
    %v36 = vlaneseq
    %v37 = vshrl.u32 %v36, 7
    %v38 = vsub.s32 0, %v37
    %v39 = vrot.slane %v21, %v38
    %v40 = vadd.f32 %v39, %v35
    %v41 = vmul.f32 %v18, %v40
    %vm42 = vcmask 517120
    %v43 = vsel %vm42, %v41, 0.0
    %44 = vadd.xlane.f32.xlu0 %v43
    %v45 = vpop.xlane.xlu0 %44
    %s46 = smul.u32 0, 2
    %v47 = vlaneseq
    %v48 = vshrl.u32 %v47, 7
    %v49 = vstv %s46
    %v50 = vadd.s32 %v49, %v48
    %vm51 = vcmp.lt.s32.totalorder %v50, 2
    %v52 = vsel %vm51, %v45, 0.0
    %vm53 = vcmask 1041408
    %v54 = vsel %vm53, %v52, 0.0
    %v55 = vrot.slane %v54, 4
    %v56 = vadd.f32 %v54, %v55
    %v57 = vrot.slane %v56, 2
    %v58 = vadd.f32 %v56, %v57
    %v59 = vrot.slane %v58, 1
    %v60 = vadd.f32 %v58, %v59
    %61 = vst [vmem:[#allocation2] sm:$0xff] %v60
    // Predicated region
    $region18: #{tpu_custom_call.1} parent=1 // pred_check
      _
    $region19: #{tpu_custom_call.1} parent=1 // pred_check_branch
      %63 = sbr.rel (0) target = $region21
    $region20: #{tpu_custom_call.1} parent=1 // pred_region
      %s65 = ssub.s32 128, 128
      %66 = vsyncadd [#allocation3], %s65
      %s68 = sshll.u32 [#allocation2], 4
      %s69 = int_to_ptr.vmem [resolvable:$true] %s68
      %71 = dma.vmem_to_hbm [thread:$0]  %s69, 128, %s4, [#allocation3]
    $region21: #{tpu_custom_call.1} parent=1 // pred_fallthru
      _
    // Predicated region
    $region22: #{tpu_custom_call.1} parent=1 // pred_check
      _
    $region23: #{tpu_custom_call.1} parent=1 // pred_check_branch
      %73 = sbr.rel (0) target = $region25
    $region24: #{tpu_custom_call.1} parent=1 // pred_region
      %74 = dma.done [#allocation3], 128
    $region25: #{tpu_custom_call.1} parent=1 // pred_fallthru
      _
    %75 = vsyncpa [#allocation3], 1

</llo_original>
